<compile_context>
chip_gen: v5e
topology: v5e:2x2
jax: 0.10.0
libtpu: 0.0.40
codegen_flags: <defaults>
</compile_context>

<pallas_src>
import jax
import jax.numpy as jnp
from jax.experimental import pallas as pl
from jax.experimental.pallas import tpu as pltpu


def _build_shift_pairs(num_fields):
    """Pair ordering used by the kernel: shifts d=1..ceil(F/2)-1 (F pairs each),
    then, for even F, the half shift d=F/2 (F/2 pairs)."""
    F = num_fields
    n_full = (F + 1) // 2 - 1
    pairs = []
    for d in range(1, n_full + 1):
        pairs += [(i, (i + d) % F) for i in range(F)]
    if F % 2 == 0:
        pairs += [(i, i + F // 2) for i in range(F // 2)]
    return pairs


def _make_afm_kernel(num_fields, embed_dim, attn_size):
    F, E, A = num_fields, embed_dim, attn_size
    n_full = (F + 1) // 2 - 1
    even = (F % 2 == 0)
    CP = F // 2 if even else F          # pairs packed per chunk
    CW_in = CP * E                      # chunk width on the inner-product side
    CW_at = CP * A                      # chunk width on the attention side

    def kernel(x_ref, wa_ref, ba_ref, pj_ref, rx_ref, ts_ref, out_ref, sc_ref):
        xb = x_ref[...]                 # (TB, F*E) f32, lane-dense
        wa = wa_ref[...]                # (CW_in, CW_at) bf16 block-diag attention weight
        ba = ba_ref[...]                # (1, CW_at)     tiled attention bias
        pj = pj_ref[...]                # (CW_at, CP)    block-diag projection weight
        rx = rx_ref[...]                # (P, P*E)       score -> lane expansion selector
        ts = ts_ref[...]                # (CW_in, E)     field-segment-sum selector

        # ---- pairwise inner products, CP pairs packed per lane-dense chunk ----
        # Field-rotation trick: x * rotate_fields(x, d) holds the F pairs of shift d
        # lane-dense; for even F split each product at the (F/2)*E vreg boundary.
        chunks = []
        for d in range(1, n_full + 1):
            s = d * E
            q = jnp.concatenate([xb[:, s:], xb[:, :s]], axis=-1)   # rotate fields left by d
            y = xb * q                                              # (TB, F*E)
            if even:
                chunks.append(y[:, :CW_in])
                chunks.append(y[:, CW_in:])
            else:
                chunks.append(y)
        if even:
            chunks.append(xb[:, :CW_in] * xb[:, CW_in:])            # pairs (i, i+F/2)

        # ---- pass 1: attention (bf16 MXU) + per-pair logits per chunk ----
        logits = []
        for c in chunks:
            attn = jnp.dot(c.astype(jnp.bfloat16), wa,
                           preferred_element_type=jnp.float32)      # (TB, CW_at)
            attn = jnp.maximum(attn + ba, 0.0)
            logits.append(jnp.dot(attn, pj,
                                  preferred_element_type=jnp.float32))  # (TB, CP)
        logits = jnp.concatenate(logits, axis=-1)                   # (TB, P), shift order
        # b_proj omitted: softmax over the pair axis is shift-invariant.

        # ---- softmax over the pair axis (single lane-dense value, stored once) ----
        m = jnp.max(logits, axis=-1, keepdims=True)
        e = jnp.exp(logits - m)
        den = jnp.sum(e, axis=-1, keepdims=True)
        scores = e * pl.reciprocal(den, approx=False)               # (TB, P)
        sc_ref[...] = scores.astype(sc_ref.dtype)

        # ---- pass 2: attn_output = sum_k scores_k * inner_k ----
        # Expand scores to 32-lane field segments with one exact 0/1 f32 matmul,
        # multiply the vreg-aligned chunks, reduce the CP segments at the end.
        sexp = jnp.dot(scores, rx, preferred_element_type=jnp.float32)   # (TB, P*E)
        acc = jnp.zeros((xb.shape[0], CW_in), jnp.float32)
        for ci, c in enumerate(chunks):
            acc = acc + sexp[:, ci * CW_in:(ci + 1) * CW_in] * c
        out_ref[...] = jnp.dot(acc, ts,
                               preferred_element_type=jnp.float32).astype(out_ref.dtype)

    return kernel


def afm_layer_forward(x, w_att, b_att, w_proj, b_proj, row, col, *, block_batch=1024):
    """AFMLayer.forward: x (B, num_fields, E) -> (attn_output (B, E), attn_scores (B, P, 1)).
    Inference mode (dropout = identity).  b_proj accepted but unused (softmax shift-invariant)."""
    B, F, E = x.shape
    A = w_att.shape[1]
    P = len(row)
    assert F >= 2 and w_att.shape == (E, A)
    assert P == F * (F - 1) // 2, "row/col must enumerate all field pairs"

    # Mapping between the kernel's shift-layout pair order and the module's order.
    shift_pairs = _build_shift_pairs(F)
    pos = {(min(a, b), max(a, b)): i for i, (a, b) in enumerate(shift_pairs)}
    perm = [pos[(min(r, c), max(r, c))] for r, c in zip(row, col)]
    assert len(set(perm)) == P, "row/col must enumerate all field pairs exactly once"

    even = (F % 2 == 0)
    CP = F // 2 if even else F
    f32 = jnp.float32

    # Wrapper-side weight prep for the lane-packed kernel.
    wa_blk = jnp.kron(jnp.eye(CP, dtype=f32), w_att.astype(f32)).astype(jnp.bfloat16)
    ba_t = jnp.tile(b_att.reshape(1, A).astype(f32), (1, CP))                     # (1, CP*A)
    pj_blk = jnp.kron(jnp.eye(CP, dtype=f32), w_proj.reshape(A, 1).astype(f32))   # (CP*A, CP)
    rx_all = jnp.kron(jnp.eye(P, dtype=f32), jnp.ones((1, E), dtype=f32))         # (P, P*E)
    ts_seg = jnp.tile(jnp.eye(E, dtype=f32), (CP, 1))                             # (CP*E, E)

    # Batch tiling: keep >= 2 grid blocks whenever possible so both v7x TensorCores
    # get work (the batch axis is marked "parallel"); TB is a multiple of 8.
    bb = max(8, (block_batch // 8) * 8)
    half_b8 = ((max(B, 2) + 1) // 2 + 7) // 8 * 8
    TB = max(8, min(bb, half_b8))
    nb = (B + TB - 1) // TB
    Bp = nb * TB

    xf = x.reshape(B, F * E).astype(f32)              # lane-dense (B, F*E)
    if Bp != B:
        xf = jnp.pad(xf, ((0, Bp - B), (0, 0)))       # zero rows are harmless, sliced off

    kernel = _make_afm_kernel(F, E, A)

    out, scores_shift = pl.pallas_call(
        kernel,
        out_shape=(jax.ShapeDtypeStruct((Bp, E), x.dtype),
                   jax.ShapeDtypeStruct((Bp, P), jnp.float32)),
        grid_spec=pltpu.PrefetchScalarGridSpec(
            num_scalar_prefetch=0,
            grid=(nb,),
            in_specs=[
                pl.BlockSpec((TB, F * E), lambda b: (b, 0)),        # x, lane-dense
                pl.BlockSpec((CP * E, CP * A), lambda b: (0, 0)),   # block-diag W_att (bf16)
                pl.BlockSpec((1, CP * A), lambda b: (0, 0)),        # tiled b_att
                pl.BlockSpec((CP * A, CP), lambda b: (0, 0)),       # block-diag W_proj
                pl.BlockSpec((P, P * E), lambda b: (0, 0)),         # score expansion selector
                pl.BlockSpec((CP * E, E), lambda b: (0, 0)),        # segment-sum selector
            ],
            out_specs=[
                pl.BlockSpec((TB, E), lambda b: (b, 0)),            # attn_output
                pl.BlockSpec((TB, P), lambda b: (b, 0)),            # attn_scores (shift order)
            ],
        ),
        compiler_params=pltpu.CompilerParams(
            dimension_semantics=("parallel",),
            vmem_limit_bytes=48 * 1024 * 1024,
        ),
    )(xf, wa_blk, ba_t, pj_blk, rx_all, ts_seg)

    if Bp != B:
        out = out[:B]
        scores_shift = scores_shift[:B]
    scores = jnp.take(scores_shift, jnp.asarray(perm, dtype=jnp.int32), axis=1)
    return out, scores.reshape(B, P, 1)


def reference_afm(x, w_att, b_att, w_proj, b_proj, row, col):
    p = x[:, jnp.asarray(row)]
    q = x[:, jnp.asarray(col)]
    inner = p * q
    attn = jax.nn.relu(jnp.einsum("bpe,ea->bpa", inner, w_att) + b_att)
    logits = jnp.sum(attn * w_proj.reshape(1, 1, -1), axis=-1, keepdims=True) + b_proj
    scores = jax.nn.softmax(logits, axis=1)
    out = jnp.sum(scores * inner, axis=1)
    return out, scores


if __name__ == "__main__":
    batch = 16
    num_fields = 8
    embed_dim = 32
    attn_size = 32

    row, col = [], []
    for i in range(num_fields - 1):
        for j in range(i + 1, num_fields):
            row.append(i)
            col.append(j)

    key = jax.random.PRNGKey(0)
    kx, kw1, kb1, kw2, kb2 = jax.random.split(key, 5)

    x = jax.random.normal(kx, (batch, num_fields, embed_dim), dtype=jnp.float32)
    # Linear(embed_dim, attn_size) / Linear(attn_size, 1) weights stored transposed (y = x @ W + b).
    w_att = jax.random.normal(kw1, (embed_dim, attn_size), dtype=jnp.float32) * 0.1
    b_att = jax.random.normal(kb1, (attn_size,), dtype=jnp.float32) * 0.1
    w_proj = jax.random.normal(kw2, (attn_size, 1), dtype=jnp.float32) * 0.1
    b_proj = jax.random.normal(kb2, (1,), dtype=jnp.float32) * 0.1

    out, scores = afm_layer_forward(x, w_att, b_att, w_proj, b_proj, row, col)
    out = jax.block_until_ready(out)
    scores = jax.block_until_ready(scores)

    ref_out, ref_scores = reference_afm(x, w_att, b_att, w_proj, b_proj, row, col)
    assert out.shape == (batch, embed_dim)
    assert scores.shape == (batch, len(row), 1)
    # The attention matmul uses bf16 MXU operands (inner products stay f32), so compare
    # at a bf16-level tolerance against the pure-f32 reference.
    assert jnp.allclose(scores, ref_scores, atol=2e-2, rtol=2e-2), \
        float(jnp.max(jnp.abs(scores - ref_scores)))
    assert jnp.allclose(out, ref_out, atol=2e-2, rtol=2e-2), \
        float(jnp.max(jnp.abs(out - ref_out)))

    print("KERNEL_OK")
</pallas_src>

<mosaic_0001>
module attributes {stable_mosaic.version = 11 : i64} {
  func.func @kernel(%arg0: i32, %arg1: memref<8x256xf32, #tpu.memory_space<vmem>>, %arg2: memref<128x128xbf16, #tpu.memory_space<vmem>>, %arg3: memref<1x128xf32, #tpu.memory_space<vmem>>, %arg4: memref<128x4xf32, #tpu.memory_space<vmem>>, %arg5: memref<28x896xf32, #tpu.memory_space<vmem>>, %arg6: memref<128x32xf32, #tpu.memory_space<vmem>>, %arg7: memref<8x32xf32, #tpu.memory_space<vmem>>, %arg8: memref<8x28xf32, #tpu.memory_space<vmem>>) attributes {dimension_semantics = [#tpu.dimension_semantics<parallel>], iteration_bounds = array<i64: 2>, scalar_prefetch = 0 : i64, scratch_operands = 0 : i64, tpu.core_type = #tpu.core_type<tc>, window_params = [{transform_indices = @transform_0, window_bounds = array<i64: 8, 256>}, {pipeline_mode = #tpu.pipeline_mode<synchronous>, transform_indices = @transform_1, window_bounds = array<i64: 128, 128>}, {pipeline_mode = #tpu.pipeline_mode<synchronous>, transform_indices = @transform_2, window_bounds = array<i64: 1, 128>}, {pipeline_mode = #tpu.pipeline_mode<synchronous>, transform_indices = @transform_3, window_bounds = array<i64: 128, 4>}, {pipeline_mode = #tpu.pipeline_mode<synchronous>, transform_indices = @transform_4, window_bounds = array<i64: 28, 896>}, {pipeline_mode = #tpu.pipeline_mode<synchronous>, transform_indices = @transform_5, window_bounds = array<i64: 128, 32>}, {transform_indices = @transform_6, window_bounds = array<i64: 8, 32>}, {transform_indices = @transform_7, window_bounds = array<i64: 8, 28>}]} {
    %c0 = arith.constant 0 : index
    %c0_0 = arith.constant 0 : index
    %0 = vector.load %arg1[%c0, %c0_0] : memref<8x256xf32, #tpu.memory_space<vmem>>, vector<8x256xf32>
    %c0_1 = arith.constant 0 : index
    %c0_2 = arith.constant 0 : index
    %1 = vector.load %arg2[%c0_1, %c0_2] : memref<128x128xbf16, #tpu.memory_space<vmem>>, vector<128x128xbf16>
    %c0_3 = arith.constant 0 : index
    %c0_4 = arith.constant 0 : index
    %2 = vector.load %arg3[%c0_3, %c0_4] : memref<1x128xf32, #tpu.memory_space<vmem>>, vector<1x128xf32>
    %c0_5 = arith.constant 0 : index
    %c0_6 = arith.constant 0 : index
    %3 = vector.load %arg4[%c0_5, %c0_6] : memref<128x4xf32, #tpu.memory_space<vmem>>, vector<128x4xf32>
    %c0_7 = arith.constant 0 : index
    %c0_8 = arith.constant 0 : index
    %4 = vector.load %arg5[%c0_7, %c0_8] : memref<28x896xf32, #tpu.memory_space<vmem>>, vector<28x896xf32>
    %c0_9 = arith.constant 0 : index
    %c0_10 = arith.constant 0 : index
    %5 = vector.load %arg6[%c0_9, %c0_10] : memref<128x32xf32, #tpu.memory_space<vmem>>, vector<128x32xf32>
    %6 = vector.extract_strided_slice %0 {offsets = [0, 32], sizes = [8, 224], strides = [1, 1]} : vector<8x256xf32> to vector<8x224xf32>
    %7 = vector.extract_strided_slice %0 {offsets = [0, 0], sizes = [8, 32], strides = [1, 1]} : vector<8x256xf32> to vector<8x32xf32>
    %8 = tpu.concatenate %6, %7 in 1 : vector<8x224xf32>, vector<8x32xf32> -> vector<8x256xf32>
    %9 = arith.mulf %0, %8 : vector<8x256xf32>
    %10 = vector.extract_strided_slice %9 {offsets = [0, 0], sizes = [8, 128], strides = [1, 1]} : vector<8x256xf32> to vector<8x128xf32>
    %11 = vector.extract_strided_slice %9 {offsets = [0, 128], sizes = [8, 128], strides = [1, 1]} : vector<8x256xf32> to vector<8x128xf32>
    %12 = vector.extract_strided_slice %0 {offsets = [0, 64], sizes = [8, 192], strides = [1, 1]} : vector<8x256xf32> to vector<8x192xf32>
    %13 = vector.extract_strided_slice %0 {offsets = [0, 0], sizes = [8, 64], strides = [1, 1]} : vector<8x256xf32> to vector<8x64xf32>
    %14 = tpu.concatenate %12, %13 in 1 : vector<8x192xf32>, vector<8x64xf32> -> vector<8x256xf32>
    %15 = arith.mulf %0, %14 : vector<8x256xf32>
    %16 = vector.extract_strided_slice %15 {offsets = [0, 0], sizes = [8, 128], strides = [1, 1]} : vector<8x256xf32> to vector<8x128xf32>
    %17 = vector.extract_strided_slice %15 {offsets = [0, 128], sizes = [8, 128], strides = [1, 1]} : vector<8x256xf32> to vector<8x128xf32>
    %18 = vector.extract_strided_slice %0 {offsets = [0, 96], sizes = [8, 160], strides = [1, 1]} : vector<8x256xf32> to vector<8x160xf32>
    %19 = vector.extract_strided_slice %0 {offsets = [0, 0], sizes = [8, 96], strides = [1, 1]} : vector<8x256xf32> to vector<8x96xf32>
    %20 = tpu.concatenate %18, %19 in 1 : vector<8x160xf32>, vector<8x96xf32> -> vector<8x256xf32>
    %21 = arith.mulf %0, %20 : vector<8x256xf32>
    %22 = vector.extract_strided_slice %21 {offsets = [0, 0], sizes = [8, 128], strides = [1, 1]} : vector<8x256xf32> to vector<8x128xf32>
    %23 = vector.extract_strided_slice %21 {offsets = [0, 128], sizes = [8, 128], strides = [1, 1]} : vector<8x256xf32> to vector<8x128xf32>
    %24 = vector.extract_strided_slice %0 {offsets = [0, 0], sizes = [8, 128], strides = [1, 1]} : vector<8x256xf32> to vector<8x128xf32>
    %25 = vector.extract_strided_slice %0 {offsets = [0, 128], sizes = [8, 128], strides = [1, 1]} : vector<8x256xf32> to vector<8x128xf32>
    %26 = arith.mulf %24, %25 : vector<8x128xf32>
    %27 = arith.truncf %10 : vector<8x128xf32> to vector<8x128xbf16>
    %cst = arith.constant dense<0.000000e+00> : vector<8x128xf32>
    %28 = tpu.matmul %27, %1, %cst {dimension_numbers = #tpu.dot_dimension_numbers<[1], [0], [0], [1], [0, 0, 1, 1], [], []>} : vector<8x128xbf16>, vector<128x128xbf16>, vector<8x128xf32> -> vector<8x128xf32>
    %29 = vector.broadcast %2 : vector<1x128xf32> to vector<8x128xf32>
    %30 = arith.addf %28, %29 : vector<8x128xf32>
    %cst_11 = arith.constant 0.000000e+00 : f32
    %31 = vector.broadcast %cst_11 : f32 to vector<8x128xf32>
    %32 = arith.maximumf %30, %31 : vector<8x128xf32>
    %cst_12 = arith.constant dense<0.000000e+00> : vector<8x4xf32>
    %33 = tpu.matmul %32, %3, %cst_12 {dimension_numbers = #tpu.dot_dimension_numbers<[1], [0], [0], [1], [0, 0, 1, 1], [], []>} : vector<8x128xf32>, vector<128x4xf32>, vector<8x4xf32> -> vector<8x4xf32>
    %34 = arith.truncf %11 : vector<8x128xf32> to vector<8x128xbf16>
    %cst_13 = arith.constant dense<0.000000e+00> : vector<8x128xf32>
    %35 = tpu.matmul %34, %1, %cst_13 {dimension_numbers = #tpu.dot_dimension_numbers<[1], [0], [0], [1], [0, 0, 1, 1], [], []>} : vector<8x128xbf16>, vector<128x128xbf16>, vector<8x128xf32> -> vector<8x128xf32>
    %36 = vector.broadcast %2 : vector<1x128xf32> to vector<8x128xf32>
    %37 = arith.addf %35, %36 : vector<8x128xf32>
    %cst_14 = arith.constant 0.000000e+00 : f32
    %38 = vector.broadcast %cst_14 : f32 to vector<8x128xf32>
    %39 = arith.maximumf %37, %38 : vector<8x128xf32>
    %cst_15 = arith.constant dense<0.000000e+00> : vector<8x4xf32>
    %40 = tpu.matmul %39, %3, %cst_15 {dimension_numbers = #tpu.dot_dimension_numbers<[1], [0], [0], [1], [0, 0, 1, 1], [], []>} : vector<8x128xf32>, vector<128x4xf32>, vector<8x4xf32> -> vector<8x4xf32>
    %41 = arith.truncf %16 : vector<8x128xf32> to vector<8x128xbf16>
    %cst_16 = arith.constant dense<0.000000e+00> : vector<8x128xf32>
    %42 = tpu.matmul %41, %1, %cst_16 {dimension_numbers = #tpu.dot_dimension_numbers<[1], [0], [0], [1], [0, 0, 1, 1], [], []>} : vector<8x128xbf16>, vector<128x128xbf16>, vector<8x128xf32> -> vector<8x128xf32>
    %43 = vector.broadcast %2 : vector<1x128xf32> to vector<8x128xf32>
    %44 = arith.addf %42, %43 : vector<8x128xf32>
    %cst_17 = arith.constant 0.000000e+00 : f32
    %45 = vector.broadcast %cst_17 : f32 to vector<8x128xf32>
    %46 = arith.maximumf %44, %45 : vector<8x128xf32>
    %cst_18 = arith.constant dense<0.000000e+00> : vector<8x4xf32>
    %47 = tpu.matmul %46, %3, %cst_18 {dimension_numbers = #tpu.dot_dimension_numbers<[1], [0], [0], [1], [0, 0, 1, 1], [], []>} : vector<8x128xf32>, vector<128x4xf32>, vector<8x4xf32> -> vector<8x4xf32>
    %48 = arith.truncf %17 : vector<8x128xf32> to vector<8x128xbf16>
    %cst_19 = arith.constant dense<0.000000e+00> : vector<8x128xf32>
    %49 = tpu.matmul %48, %1, %cst_19 {dimension_numbers = #tpu.dot_dimension_numbers<[1], [0], [0], [1], [0, 0, 1, 1], [], []>} : vector<8x128xbf16>, vector<128x128xbf16>, vector<8x128xf32> -> vector<8x128xf32>
    %50 = vector.broadcast %2 : vector<1x128xf32> to vector<8x128xf32>
    %51 = arith.addf %49, %50 : vector<8x128xf32>
    %cst_20 = arith.constant 0.000000e+00 : f32
    %52 = vector.broadcast %cst_20 : f32 to vector<8x128xf32>
    %53 = arith.maximumf %51, %52 : vector<8x128xf32>
    %cst_21 = arith.constant dense<0.000000e+00> : vector<8x4xf32>
    %54 = tpu.matmul %53, %3, %cst_21 {dimension_numbers = #tpu.dot_dimension_numbers<[1], [0], [0], [1], [0, 0, 1, 1], [], []>} : vector<8x128xf32>, vector<128x4xf32>, vector<8x4xf32> -> vector<8x4xf32>
    %55 = arith.truncf %22 : vector<8x128xf32> to vector<8x128xbf16>
    %cst_22 = arith.constant dense<0.000000e+00> : vector<8x128xf32>
    %56 = tpu.matmul %55, %1, %cst_22 {dimension_numbers = #tpu.dot_dimension_numbers<[1], [0], [0], [1], [0, 0, 1, 1], [], []>} : vector<8x128xbf16>, vector<128x128xbf16>, vector<8x128xf32> -> vector<8x128xf32>
    %57 = vector.broadcast %2 : vector<1x128xf32> to vector<8x128xf32>
    %58 = arith.addf %56, %57 : vector<8x128xf32>
    %cst_23 = arith.constant 0.000000e+00 : f32
    %59 = vector.broadcast %cst_23 : f32 to vector<8x128xf32>
    %60 = arith.maximumf %58, %59 : vector<8x128xf32>
    %cst_24 = arith.constant dense<0.000000e+00> : vector<8x4xf32>
    %61 = tpu.matmul %60, %3, %cst_24 {dimension_numbers = #tpu.dot_dimension_numbers<[1], [0], [0], [1], [0, 0, 1, 1], [], []>} : vector<8x128xf32>, vector<128x4xf32>, vector<8x4xf32> -> vector<8x4xf32>
    %62 = arith.truncf %23 : vector<8x128xf32> to vector<8x128xbf16>
    %cst_25 = arith.constant dense<0.000000e+00> : vector<8x128xf32>
    %63 = tpu.matmul %62, %1, %cst_25 {dimension_numbers = #tpu.dot_dimension_numbers<[1], [0], [0], [1], [0, 0, 1, 1], [], []>} : vector<8x128xbf16>, vector<128x128xbf16>, vector<8x128xf32> -> vector<8x128xf32>
    %64 = vector.broadcast %2 : vector<1x128xf32> to vector<8x128xf32>
    %65 = arith.addf %63, %64 : vector<8x128xf32>
    %cst_26 = arith.constant 0.000000e+00 : f32
    %66 = vector.broadcast %cst_26 : f32 to vector<8x128xf32>
    %67 = arith.maximumf %65, %66 : vector<8x128xf32>
    %cst_27 = arith.constant dense<0.000000e+00> : vector<8x4xf32>
    %68 = tpu.matmul %67, %3, %cst_27 {dimension_numbers = #tpu.dot_dimension_numbers<[1], [0], [0], [1], [0, 0, 1, 1], [], []>} : vector<8x128xf32>, vector<128x4xf32>, vector<8x4xf32> -> vector<8x4xf32>
    %69 = arith.truncf %26 : vector<8x128xf32> to vector<8x128xbf16>
    %cst_28 = arith.constant dense<0.000000e+00> : vector<8x128xf32>
    %70 = tpu.matmul %69, %1, %cst_28 {dimension_numbers = #tpu.dot_dimension_numbers<[1], [0], [0], [1], [0, 0, 1, 1], [], []>} : vector<8x128xbf16>, vector<128x128xbf16>, vector<8x128xf32> -> vector<8x128xf32>
    %71 = vector.broadcast %2 : vector<1x128xf32> to vector<8x128xf32>
    %72 = arith.addf %70, %71 : vector<8x128xf32>
    %cst_29 = arith.constant 0.000000e+00 : f32
    %73 = vector.broadcast %cst_29 : f32 to vector<8x128xf32>
    %74 = arith.maximumf %72, %73 : vector<8x128xf32>
    %cst_30 = arith.constant dense<0.000000e+00> : vector<8x4xf32>
    %75 = tpu.matmul %74, %3, %cst_30 {dimension_numbers = #tpu.dot_dimension_numbers<[1], [0], [0], [1], [0, 0, 1, 1], [], []>} : vector<8x128xf32>, vector<128x4xf32>, vector<8x4xf32> -> vector<8x4xf32>
    %76 = tpu.concatenate %33, %40, %47, %54, %61, %68, %75 in 1 : vector<8x4xf32>, vector<8x4xf32>, vector<8x4xf32>, vector<8x4xf32>, vector<8x4xf32>, vector<8x4xf32>, vector<8x4xf32> -> vector<8x28xf32>
    %cst_31 = arith.constant dense<0xFF800000> : vector<8xf32>
    %77 = vector.multi_reduction <maximumf>, %76, %cst_31 [1] : vector<8x28xf32> to vector<8xf32>
    %78 = vector.shape_cast %77 : vector<8xf32> to vector<8x1xf32>
    %79 = vector.broadcast %78 : vector<8x1xf32> to vector<8x28xf32>
    %80 = arith.subf %76, %79 : vector<8x28xf32>
    %81 = math.exp %80 : vector<8x28xf32>
    %cst_32 = arith.constant dense<0.000000e+00> : vector<8xf32>
    %82 = vector.multi_reduction <add>, %81, %cst_32 [1] : vector<8x28xf32> to vector<8xf32>
    %83 = vector.shape_cast %82 : vector<8xf32> to vector<8x1xf32>
    %84 = tpu.reciprocal %83 : vector<8x1xf32> -> vector<8x1xf32>
    %85 = vector.broadcast %84 : vector<8x1xf32> to vector<8x28xf32>
    %86 = arith.mulf %81, %85 : vector<8x28xf32>
    %c0_33 = arith.constant 0 : index
    %c0_34 = arith.constant 0 : index
    %87 = vector.load %arg8[%c0_33, %c0_34] : memref<8x28xf32, #tpu.memory_space<vmem>>, vector<8x28xf32>
    tpu.vector_store %arg8[%c0_33, %c0_34], %86 {strides = array<i32>} : memref<8x28xf32, #tpu.memory_space<vmem>>, vector<8x28xf32>,
    %cst_35 = arith.constant dense<0.000000e+00> : vector<8x896xf32>
    %88 = tpu.matmul %86, %4, %cst_35 {dimension_numbers = #tpu.dot_dimension_numbers<[1], [0], [0], [1], [0, 0, 1, 1], [], []>} : vector<8x28xf32>, vector<28x896xf32>, vector<8x896xf32> -> vector<8x896xf32>
    %cst_36 = arith.constant 0.000000e+00 : f32
    %89 = vector.broadcast %cst_36 : f32 to vector<8x128xf32>
    %90 = vector.extract_strided_slice %88 {offsets = [0, 0], sizes = [8, 128], strides = [1, 1]} : vector<8x896xf32> to vector<8x128xf32>
    %91 = arith.mulf %90, %10 : vector<8x128xf32>
    %92 = arith.addf %89, %91 : vector<8x128xf32>
    %93 = vector.extract_strided_slice %88 {offsets = [0, 128], sizes = [8, 128], strides = [1, 1]} : vector<8x896xf32> to vector<8x128xf32>
    %94 = arith.mulf %93, %11 : vector<8x128xf32>
    %95 = arith.addf %92, %94 : vector<8x128xf32>
    %96 = vector.extract_strided_slice %88 {offsets = [0, 256], sizes = [8, 128], strides = [1, 1]} : vector<8x896xf32> to vector<8x128xf32>
    %97 = arith.mulf %96, %16 : vector<8x128xf32>
    %98 = arith.addf %95, %97 : vector<8x128xf32>
    %99 = vector.extract_strided_slice %88 {offsets = [0, 384], sizes = [8, 128], strides = [1, 1]} : vector<8x896xf32> to vector<8x128xf32>
    %100 = arith.mulf %99, %17 : vector<8x128xf32>
    %101 = arith.addf %98, %100 : vector<8x128xf32>
    %102 = vector.extract_strided_slice %88 {offsets = [0, 512], sizes = [8, 128], strides = [1, 1]} : vector<8x896xf32> to vector<8x128xf32>
    %103 = arith.mulf %102, %22 : vector<8x128xf32>
    %104 = arith.addf %101, %103 : vector<8x128xf32>
    %105 = vector.extract_strided_slice %88 {offsets = [0, 640], sizes = [8, 128], strides = [1, 1]} : vector<8x896xf32> to vector<8x128xf32>
    %106 = arith.mulf %105, %23 : vector<8x128xf32>
    %107 = arith.addf %104, %106 : vector<8x128xf32>
    %108 = vector.extract_strided_slice %88 {offsets = [0, 768], sizes = [8, 128], strides = [1, 1]} : vector<8x896xf32> to vector<8x128xf32>
    %109 = arith.mulf %108, %26 : vector<8x128xf32>
    %110 = arith.addf %107, %109 : vector<8x128xf32>
    %cst_37 = arith.constant dense<0.000000e+00> : vector<8x32xf32>
    %111 = tpu.matmul %110, %5, %cst_37 {dimension_numbers = #tpu.dot_dimension_numbers<[1], [0], [0], [1], [0, 0, 1, 1], [], []>} : vector<8x128xf32>, vector<128x32xf32>, vector<8x32xf32> -> vector<8x32xf32>
    %c0_38 = arith.constant 0 : index
    %c0_39 = arith.constant 0 : index
    %112 = vector.load %arg7[%c0_38, %c0_39] : memref<8x32xf32, #tpu.memory_space<vmem>>, vector<8x32xf32>
    tpu.vector_store %arg7[%c0_38, %c0_39], %111 {strides = array<i32>} : memref<8x32xf32, #tpu.memory_space<vmem>>, vector<8x32xf32>,
    return
  }
  func.func @transform_0(%arg0: i32) -> (i32, i32) {
    %c0_i32 = arith.constant 0 : i32
    %c0_i32_0 = arith.constant 0 : i32
    return %arg0, %c0_i32 : i32, i32
  }
  func.func @transform_1(%arg0: i32) -> (i32, i32) {
    %c0_i32 = arith.constant 0 : i32
    %c0_i32_0 = arith.constant 0 : i32
    %c0_i32_1 = arith.constant 0 : i32
    return %c0_i32, %c0_i32_0 : i32, i32
  }
  func.func @transform_2(%arg0: i32) -> (i32, i32) {
    %c0_i32 = arith.constant 0 : i32
    %c0_i32_0 = arith.constant 0 : i32
    %c0_i32_1 = arith.constant 0 : i32
    return %c0_i32, %c0_i32_0 : i32, i32
  }
  func.func @transform_3(%arg0: i32) -> (i32, i32) {
    %c0_i32 = arith.constant 0 : i32
    %c0_i32_0 = arith.constant 0 : i32
    %c0_i32_1 = arith.constant 0 : i32
    return %c0_i32, %c0_i32_0 : i32, i32
  }
  func.func @transform_4(%arg0: i32) -> (i32, i32) {
    %c0_i32 = arith.constant 0 : i32
    %c0_i32_0 = arith.constant 0 : i32
    %c0_i32_1 = arith.constant 0 : i32
    return %c0_i32, %c0_i32_0 : i32, i32
  }
  func.func @transform_5(%arg0: i32) -> (i32, i32) {
    %c0_i32 = arith.constant 0 : i32
    %c0_i32_0 = arith.constant 0 : i32
    %c0_i32_1 = arith.constant 0 : i32
    return %c0_i32, %c0_i32_0 : i32, i32
  }
  func.func @transform_6(%arg0: i32) -> (i32, i32) {
    %c0_i32 = arith.constant 0 : i32
    %c0_i32_0 = arith.constant 0 : i32
    return %arg0, %c0_i32 : i32, i32
  }
  func.func @transform_7(%arg0: i32) -> (i32, i32) {
    %c0_i32 = arith.constant 0 : i32
    %c0_i32_0 = arith.constant 0 : i32
    return %arg0, %c0_i32 : i32, i32
  }
}

</mosaic_0001>

<llo_original>
// kernel: tpu_custom_call.1
$region0: #{tpu_custom_call.1}
  #allocation0 [shape = 'u32[]', space=smem, size = 0x4, offset = 0x4, fixed_abs, tag = 'smem constant byte address 0x4 - core index']
  #allocation1 [shape = 'u32[72,128]{1,0:T(1,128)}', space=vmem, size = 0x9000, scoped, tag = 'internal scratch']
  %s0 = inlined_call_operand.vmem [shape: f32[16,256], index: 0, kind: input, shape index: {}]
  %s1 = inlined_call_operand.hbm [shape: bf16[128,128], index: 1, kind: input, shape index: {}]
  %s2 = inlined_call_operand.vmem [shape: f32[1,128], index: 2, kind: input, shape index: {}]
  %s3 = inlined_call_operand.vmem [shape: f32[128,4], index: 3, kind: input, shape index: {}]
  %s4 = inlined_call_operand.vmem [shape: f32[28,896], index: 4, kind: input, shape index: {}]
  %s5 = inlined_call_operand.vmem [shape: f32[128,32], index: 5, kind: input, shape index: {}]
  %s6 = inlined_call_operand.hbm [shape: f32[16,32], index: 6, kind: output, shape index: {0}]
  %s7 = inlined_call_operand.hbm [shape: f32[16,28], index: 7, kind: output, shape index: {1}]
  %8 = xla_tuple %s6, %s7
  %s9 = sld [smem:[#allocation0]]
  $region69: #{tpu_custom_call.1} parent=0
    _
  %s11 = ssub.s32 1, %s9
  %s12 = scalar_select 0, %s11, %s9
  $region1: #{tpu_custom_call.1} parent=0
    #allocation2 [shape = 'u8[32768]{0}', space=vmem, size = 0x8000, scoped, tag = 'input window, operand 1, single buffered']
    #allocation3 [shape = 's32[2]{0}', space=sflag, size = 0x8, scoped, tag = 'scoped memory for tpu_custom_call.1']
    #allocation4 [shape = 's32[2]{0}', space=sflag, size = 0x8, scoped, tag = 'scoped memory for tpu_custom_call.1']
    #allocation5 [shape = 'u8[8192]{0}', space=vmem, size = 0x2000, scoped, tag = 'output window, operand 0']
    #allocation6 [shape = 'u8[8192]{0}', space=vmem, size = 0x2000, scoped, tag = 'output window, operand 1']
    #allocation7 [shape = 's32[2]{0}', space=sflag, size = 0x8, scoped, tag = 'scoped memory for tpu_custom_call.1']
    %13 = vsyncpa [#allocation3], 0
    %14 = vsyncpa [#allocation4], 0
    %s15 = scalar_lea.sflag [#allocation4], 1
    %16 = vsyncpa %s15, 0
    %17 = vsyncpa [#allocation7], 0
    %s18 = scalar_lea.sflag [#allocation7], 1
    %19 = vsyncpa %s18, 0
    loop: start=0, step=1, limit=4
    $region2: #{tpu_custom_call.1} parent=1 // loop_pre_header
      _
    $region3: #{tpu_custom_call.1} parent=1 // loop_header
      %s21 = sphi 0, %s25
      %p22 = scmp.ge.s32.totalorder %s21, 4
      %s31 = sphi 0, %s33
      %s34 = sphi 0, %s31
      %s35 = sphi 0, %s34
      %s51 = sphi 0, %s35
      %s55 = sphi 0, %s55
      %s57 = sphi 0, %s55
      %s58 = sphi 0, %s57
      %s72 = sphi 0, %s58
      %s76 = sphi 0, %s76
      %s78 = sphi 0, %s76
      %s79 = sphi 0, %s78
      %s93 = sphi 0, %s79
      %s97 = sphi 0, %s97
      %s99 = sphi 0, %s97
      %s100 = sphi 0, %s99
      %s114 = sphi 0, %s100
      %s118 = sphi 0, %s118
      %s120 = sphi 0, %s118
      %s121 = sphi 0, %s120
      %s135 = sphi 0, %s121
      %s139 = sphi 0, %s139
      %s141 = sphi 0, %s139
      %s142 = sphi 0, %s141
      %s156 = sphi 0, %s142
      %s162 = sphi 0, %s164
      %s165 = sphi 0, %s162
      %s166 = sphi 0, %s165
      %s182 = sphi 0, %s166
      %s188 = sphi 0, %s190
      %s191 = sphi 0, %s188
      %s192 = sphi 0, %s191
      %s208 = sphi 0, %s192
    $region4: #{tpu_custom_call.1} parent=1 // loop_header_branch
      %24 = sbr.rel (%p22) target = $region8
    $region5: #{tpu_custom_call.1} parent=1 // loop_body
      %s26 = ssub.s32 %s21, 1
      %s27 = ssub.s32 %s21, 2
      %s28 = sadd.s32 %s21, 1
      %s29 = ssub.s32 %s21, %s28
      %p30 = scmp.eq.s32.totalorder %s29, 0
      %s32 = sadd.s32 %s31, 1
      %s33 = scalar_select %p30, %s31, %s32
      %p36 = pneg %p30
      %p37 = scmp.eq.s32.totalorder %s21, 1
      %p38 = por %p36, %p37
      %p39 = scmp.ne.s32.totalorder %s31, %s34
      %p40 = scmp.eq.s32.totalorder %s21, 0
      %p41 = por %p39, %p40
      %p42 = scmp.ne.s32.totalorder %s31, %s34
      %p43 = scmp.eq.s32.totalorder %s26, 1
      %p44 = por %p42, %p43
      %p45 = scmp.ne.s32.totalorder %s34, %s35
      %p46 = scmp.eq.s32.totalorder %s26, 0
      %p47 = por %p45, %p46
      %p48 = scmp.ne.s32.totalorder %s34, %s35
      %p49 = scmp.eq.s32.totalorder %s27, 1
      %p50 = por %p48, %p49
      %p52 = scmp.ne.s32.totalorder %s35, %s51
      %p53 = scmp.eq.s32.totalorder %s27, 0
      %p54 = por %p52, %p53
      %s56 = sadd.s32 %s55, 1
      %p59 = scmp.eq.s32.totalorder %s21, 1
      %p60 = scmp.ne.s32.totalorder %s55, %s57
      %p61 = scmp.eq.s32.totalorder %s21, 0
      %p62 = por %p60, %p61
      %p63 = scmp.ne.s32.totalorder %s55, %s57
      %p64 = scmp.eq.s32.totalorder %s26, 1
      %p65 = por %p63, %p64
      %p66 = scmp.ne.s32.totalorder %s57, %s58
      %p67 = scmp.eq.s32.totalorder %s26, 0
      %p68 = por %p66, %p67
      %p69 = scmp.ne.s32.totalorder %s57, %s58
      %p70 = scmp.eq.s32.totalorder %s27, 1
      %p71 = por %p69, %p70
      %p73 = scmp.ne.s32.totalorder %s58, %s72
      %p74 = scmp.eq.s32.totalorder %s27, 0
      %p75 = por %p73, %p74
      %s77 = sadd.s32 %s76, 1
      %p80 = scmp.eq.s32.totalorder %s21, 1
      %p81 = scmp.ne.s32.totalorder %s76, %s78
      %p82 = scmp.eq.s32.totalorder %s21, 0
      %p83 = por %p81, %p82
      %p84 = scmp.ne.s32.totalorder %s76, %s78
      %p85 = scmp.eq.s32.totalorder %s26, 1
      %p86 = por %p84, %p85
      %p87 = scmp.ne.s32.totalorder %s78, %s79
      %p88 = scmp.eq.s32.totalorder %s26, 0
      %p89 = por %p87, %p88
      %p90 = scmp.ne.s32.totalorder %s78, %s79
      %p91 = scmp.eq.s32.totalorder %s27, 1
      %p92 = por %p90, %p91
      %p94 = scmp.ne.s32.totalorder %s79, %s93
      %p95 = scmp.eq.s32.totalorder %s27, 0
      %p96 = por %p94, %p95
      %s98 = sadd.s32 %s97, 1
      %p101 = scmp.eq.s32.totalorder %s21, 1
      %p102 = scmp.ne.s32.totalorder %s97, %s99
      %p103 = scmp.eq.s32.totalorder %s21, 0
      %p104 = por %p102, %p103
      %p105 = scmp.ne.s32.totalorder %s97, %s99
      %p106 = scmp.eq.s32.totalorder %s26, 1
      %p107 = por %p105, %p106
      %p108 = scmp.ne.s32.totalorder %s99, %s100
      %p109 = scmp.eq.s32.totalorder %s26, 0
      %p110 = por %p108, %p109
      %p111 = scmp.ne.s32.totalorder %s99, %s100
      %p112 = scmp.eq.s32.totalorder %s27, 1
      %p113 = por %p111, %p112
      %p115 = scmp.ne.s32.totalorder %s100, %s114
      %p116 = scmp.eq.s32.totalorder %s27, 0
      %p117 = por %p115, %p116
      %s119 = sadd.s32 %s118, 1
      %p122 = scmp.eq.s32.totalorder %s21, 1
      %p123 = scmp.ne.s32.totalorder %s118, %s120
      %p124 = scmp.eq.s32.totalorder %s21, 0
      %p125 = por %p123, %p124
      %p126 = scmp.ne.s32.totalorder %s118, %s120
      %p127 = scmp.eq.s32.totalorder %s26, 1
      %p128 = por %p126, %p127
      %p129 = scmp.ne.s32.totalorder %s120, %s121
      %p130 = scmp.eq.s32.totalorder %s26, 0
      %p131 = por %p129, %p130
      %p132 = scmp.ne.s32.totalorder %s120, %s121
      %p133 = scmp.eq.s32.totalorder %s27, 1
      %p134 = por %p132, %p133
      %p136 = scmp.ne.s32.totalorder %s121, %s135
      %p137 = scmp.eq.s32.totalorder %s27, 0
      %p138 = por %p136, %p137
      %s140 = sadd.s32 %s139, 1
      %p143 = scmp.eq.s32.totalorder %s21, 1
      %p144 = scmp.ne.s32.totalorder %s139, %s141
      %p145 = scmp.eq.s32.totalorder %s21, 0
      %p146 = por %p144, %p145
      %p147 = scmp.ne.s32.totalorder %s139, %s141
      %p148 = scmp.eq.s32.totalorder %s26, 1
      %p149 = por %p147, %p148
      %p150 = scmp.ne.s32.totalorder %s141, %s142
      %p151 = scmp.eq.s32.totalorder %s26, 0
      %p152 = por %p150, %p151
      %p153 = scmp.ne.s32.totalorder %s141, %s142
      %p154 = scmp.eq.s32.totalorder %s27, 1
      %p155 = por %p153, %p154
      %p157 = scmp.ne.s32.totalorder %s142, %s156
      %p158 = scmp.eq.s32.totalorder %s27, 0
      %p159 = por %p157, %p158
      %s160 = ssub.s32 %s21, %s28
      %p161 = scmp.eq.s32.totalorder %s160, 0
      %s163 = sadd.s32 %s162, 1
      %s164 = scalar_select %p161, %s162, %s163
      %p167 = pneg %p161
      %p168 = scmp.eq.s32.totalorder %s21, 1
      %p169 = por %p167, %p168
      %p170 = scmp.ne.s32.totalorder %s162, %s165
      %p171 = scmp.eq.s32.totalorder %s21, 0
      %p172 = por %p170, %p171
      %p173 = scmp.ne.s32.totalorder %s162, %s165
      %p174 = scmp.eq.s32.totalorder %s26, 1
      %p175 = por %p173, %p174
      %p176 = scmp.ne.s32.totalorder %s165, %s166
      %p177 = scmp.eq.s32.totalorder %s26, 0
      %p178 = por %p176, %p177
      %p179 = scmp.ne.s32.totalorder %s165, %s166
      %p180 = scmp.eq.s32.totalorder %s27, 1
      %p181 = por %p179, %p180
      %p183 = scmp.ne.s32.totalorder %s166, %s182
      %p184 = scmp.eq.s32.totalorder %s27, 0
      %p185 = por %p183, %p184
      %s186 = ssub.s32 %s21, %s28
      %p187 = scmp.eq.s32.totalorder %s186, 0
      %s189 = sadd.s32 %s188, 1
      %s190 = scalar_select %p187, %s188, %s189
      %p193 = pneg %p187
      %p194 = scmp.eq.s32.totalorder %s21, 1
      %p195 = por %p193, %p194
      %p196 = scmp.ne.s32.totalorder %s188, %s191
      %p197 = scmp.eq.s32.totalorder %s21, 0
      %p198 = por %p196, %p197
      %p199 = scmp.ne.s32.totalorder %s188, %s191
      %p200 = scmp.eq.s32.totalorder %s26, 1
      %p201 = por %p199, %p200
      %p202 = scmp.ne.s32.totalorder %s191, %s192
      %p203 = scmp.eq.s32.totalorder %s26, 0
      %p204 = por %p202, %p203
      %p205 = scmp.ne.s32.totalorder %s191, %s192
      %p206 = scmp.eq.s32.totalorder %s27, 1
      %p207 = por %p205, %p206
      %p209 = scmp.ne.s32.totalorder %s192, %s208
      %p210 = scmp.eq.s32.totalorder %s27, 0
      %p211 = por %p209, %p210
      %p212 = scmp.le.s32.totalorder 1, %s21
      %p213 = scmp.lt.s32.totalorder %s21, 3
      %p214 = pnand %p212, %p213
      %p215 = pneg %p214
      // Predicated region
      $region9: #{tpu_custom_call.1} parent=5 // pred_check
        _
      $region10: #{tpu_custom_call.1} parent=5 // pred_check_branch
        %217 = sbr.rel (%p214) target = $region12
      $region11: #{tpu_custom_call.1} parent=5 // pred_region
        %s218 = ssub.s32 %s21, 1
        // Predicated region
        $region13: #{tpu_custom_call.1} parent=11 // pred_check
          %p219 = pneg %p68
        $region14: #{tpu_custom_call.1} parent=11 // pred_check_branch
          %221 = sbr.rel (%p219) target = $region16
        $region15: #{tpu_custom_call.1} parent=11 // pred_region
          %223 = vsyncadd [#allocation3], 0
          %s224 = sshll.u32 %s1, 4
          %s225 = int_to_ptr.hbm [resolvable:$true] %s224
          %s226 = sshll.u32 [#allocation2], 4
          %s227 = int_to_ptr.vmem [resolvable:$true] %s226
          %232 = dma.hbm_to_vmem [thread:$0]  %s225, 1024, %s227, [#allocation3], 64, 64, 4
        $region16: #{tpu_custom_call.1} parent=11 // pred_fallthru
          _
        // Predicated region
        $region17: #{tpu_custom_call.1} parent=11 // pred_check
          %p233 = pneg %p89
        $region18: #{tpu_custom_call.1} parent=11 // pred_check_branch
          %235 = sbr.rel (%p233) target = $region20
        $region19: #{tpu_custom_call.1} parent=11 // pred_region
          _
        $region20: #{tpu_custom_call.1} parent=11 // pred_fallthru
          _
        // Predicated region
        $region21: #{tpu_custom_call.1} parent=11 // pred_check
          %p236 = pneg %p110
        $region22: #{tpu_custom_call.1} parent=11 // pred_check_branch
          %238 = sbr.rel (%p236) target = $region24
        $region23: #{tpu_custom_call.1} parent=11 // pred_region
          _
        $region24: #{tpu_custom_call.1} parent=11 // pred_fallthru
          _
        // Predicated region
        $region25: #{tpu_custom_call.1} parent=11 // pred_check
          %p239 = pneg %p131
        $region26: #{tpu_custom_call.1} parent=11 // pred_check_branch
          %241 = sbr.rel (%p239) target = $region28
        $region27: #{tpu_custom_call.1} parent=11 // pred_region
          _
        $region28: #{tpu_custom_call.1} parent=11 // pred_fallthru
          _
        // Predicated region
        $region29: #{tpu_custom_call.1} parent=11 // pred_check
          %p242 = pneg %p152
        $region30: #{tpu_custom_call.1} parent=11 // pred_check_branch
          %244 = sbr.rel (%p242) target = $region32
        $region31: #{tpu_custom_call.1} parent=11 // pred_region
          _
        $region32: #{tpu_custom_call.1} parent=11 // pred_fallthru
          _
      $region12: #{tpu_custom_call.1} parent=5 // pred_fallthru
        _
      %p245 = scmp.lt.s32.totalorder %s21, 2
      // Predicated region
      $region33: #{tpu_custom_call.1} parent=5 // pred_check
        %p246 = pneg %p245
      $region34: #{tpu_custom_call.1} parent=5 // pred_check_branch
        %248 = sbr.rel (%p246) target = $region36
      $region35: #{tpu_custom_call.1} parent=5 // pred_region
        // Predicated region
        $region37: #{tpu_custom_call.1} parent=35 // pred_check
          %p249 = pneg %p41
        $region38: #{tpu_custom_call.1} parent=35 // pred_check_branch
          %251 = sbr.rel (%p249) target = $region40
        $region39: #{tpu_custom_call.1} parent=35 // pred_region
          %p252 = scmp.lt.s32.totalorder %s21, 1
          %s253 = scalar_select %p252, %s21, 1
          %s254 = smul.addr %s253, 2
          %s255 = smul.addr %s254, 8
          %s256 = scalar_lea.vmem %s0, %s255
        $region40: #{tpu_custom_call.1} parent=35 // pred_fallthru
          _
      $region36: #{tpu_custom_call.1} parent=5 // pred_fallthru
        _
      %p257 = scmp.le.s32.totalorder 1, %s21
      %p258 = scmp.lt.s32.totalorder %s21, 3
      %p259 = pnand %p257, %p258
      %p260 = pneg %p259
      // Predicated region
      $region41: #{tpu_custom_call.1} parent=5 // pred_check
        _
      $region42: #{tpu_custom_call.1} parent=5 // pred_check_branch
        %262 = sbr.rel (%p259) target = $region44
      $region43: #{tpu_custom_call.1} parent=5 // pred_region
        %s263 = ssub.s32 %s21, 1
        // Predicated region
        $region45: #{tpu_custom_call.1} parent=43 // pred_check
          %p264 = pneg %p68
        $region46: #{tpu_custom_call.1} parent=43 // pred_check_branch
          %266 = sbr.rel (%p264) target = $region48
        $region47: #{tpu_custom_call.1} parent=43 // pred_region
          %268 = dma.done [#allocation3], 1024
        $region48: #{tpu_custom_call.1} parent=43 // pred_fallthru
          _
        %p269 = scmp.lt.s32.totalorder %s26, 1
        %s270 = scalar_select %p269, %s26, 1
        %s271 = smul.addr %s270, 2
        %s272 = smul.addr %s271, 8
        %s273 = scalar_lea.vmem %s0, %s272
        %p274 = pneg %p47
        %p275 = pneg %p44
        %p276 = pneg %p68
        %p277 = pneg %p65
        %p278 = pneg %p89
        %p279 = pneg %p86
        %p280 = pneg %p110
        %p281 = pneg %p107
        %p282 = pneg %p131
        %p283 = pneg %p128
        %p284 = pneg %p152
        %p285 = pneg %p149
        %p286 = pneg %p178
        %p287 = pneg %p175
        %s288 = sand.u32 %s165, 1
        %s289 = scalar_lea.sflag [#allocation4], %s288
        %s290 = sand.u32 %s165, 1
        %s291 = smul.addr %s290, 8
        %s292 = scalar_lea.vmem [#allocation5], %s291
        %p293 = pneg %p204
        %p294 = pneg %p201
        %s295 = sand.u32 %s191, 1
        %s296 = scalar_lea.sflag [#allocation7], %s295
        %s297 = sand.u32 %s191, 1
        %s298 = smul.addr %s297, 8
        %s299 = scalar_lea.vmem [#allocation6], %s298
        %p300 = scmp.lt.s32.totalorder %s26, 1
        %s301 = scalar_select %p300, %s26, 1
        %s302 = smul.addr %s301, 2
        %s303 = smul.addr %s302, 8
        %s304 = scalar_lea.vmem %s0, %s303
        %v305 = vld [vmem:[%s304] sm:$0xff]
        %v306 = vld [vmem:[%s304 + $0x8] sm:$0xff]
        %v307 = vld [vmem:[#allocation2] sm:$0xf]
        %v308 = vld [vmem:[#allocation2 + $0x4] sm:$0xf]
        %v309 = vld [vmem:[#allocation2 + $0x8] sm:$0xf]
        %v310 = vld [vmem:[#allocation2 + $0xc] sm:$0xf]
        %v311 = vld [vmem:[#allocation2 + $0x10] sm:$0xf]
        %v312 = vld [vmem:[#allocation2 + $0x14] sm:$0xf]
        %v313 = vld [vmem:[#allocation2 + $0x18] sm:$0xf]
        %v314 = vld [vmem:[#allocation2 + $0x1c] sm:$0xf]
        %v315 = vld [vmem:[#allocation2 + $0x20] sm:$0xf]
        %v316 = vld [vmem:[#allocation2 + $0x24] sm:$0xf]
        %v317 = vld [vmem:[#allocation2 + $0x28] sm:$0xf]
        %v318 = vld [vmem:[#allocation2 + $0x2c] sm:$0xf]
        %v319 = vld [vmem:[#allocation2 + $0x30] sm:$0xf]
        %v320 = vld [vmem:[#allocation2 + $0x34] sm:$0xf]
        %v321 = vld [vmem:[#allocation2 + $0x38] sm:$0xf]
        %v322 = vld [vmem:[#allocation2 + $0x3c] sm:$0xf]
        %v323 = vld [vmem:[%s2] sm:$0x1]
        %v324 = vld [vmem:[%s3] sm:$0xff]
        %v325 = vld [vmem:[%s3 + $0x8] sm:$0xff]
        %v326 = vld [vmem:[%s3 + $0x10] sm:$0xff]
        %v327 = vld [vmem:[%s3 + $0x18] sm:$0xff]
        %v328 = vld [vmem:[%s3 + $0x20] sm:$0xff]
        %v329 = vld [vmem:[%s3 + $0x28] sm:$0xff]
        %v330 = vld [vmem:[%s3 + $0x30] sm:$0xff]
        %v331 = vld [vmem:[%s3 + $0x38] sm:$0xff]
        %v332 = vld [vmem:[%s3 + $0x40] sm:$0xff]
        %v333 = vld [vmem:[%s3 + $0x48] sm:$0xff]
        %v334 = vld [vmem:[%s3 + $0x50] sm:$0xff]
        %v335 = vld [vmem:[%s3 + $0x58] sm:$0xff]
        %v336 = vld [vmem:[%s3 + $0x60] sm:$0xff]
        %v337 = vld [vmem:[%s3 + $0x68] sm:$0xff]
        %v338 = vld [vmem:[%s3 + $0x70] sm:$0xff]
        %v339 = vld [vmem:[%s3 + $0x78] sm:$0xff]
        %v340 = vld [vmem:[%s4] sm:$0xff]
        %v341 = vld [vmem:[%s4 + $0x8] sm:$0xff]
        %v342 = vld [vmem:[%s4 + $0x10] sm:$0xff]
        %v343 = vld [vmem:[%s4 + $0x18] sm:$0xff]
        %v344 = vld [vmem:[%s4 + $0x20] sm:$0xff]
        %v345 = vld [vmem:[%s4 + $0x28] sm:$0xff]
        %v346 = vld [vmem:[%s4 + $0x30] sm:$0xff]
        %v347 = vld [vmem:[%s4 + $0x38] sm:$0xff]
        %v348 = vld [vmem:[%s4 + $0x40] sm:$0xff]
        %v349 = vld [vmem:[%s4 + $0x48] sm:$0xff]
        %v350 = vld [vmem:[%s4 + $0x50] sm:$0xff]
        %v351 = vld [vmem:[%s4 + $0x58] sm:$0xff]
        %v352 = vld [vmem:[%s4 + $0x60] sm:$0xff]
        %v353 = vld [vmem:[%s4 + $0x68] sm:$0xff]
        %v354 = vld [vmem:[%s4 + $0x70] sm:$0xff]
        %v355 = vld [vmem:[%s4 + $0x78] sm:$0xff]
        %v356 = vld [vmem:[%s4 + $0x80] sm:$0xff]
        %v357 = vld [vmem:[%s4 + $0x88] sm:$0xff]
        %v358 = vld [vmem:[%s4 + $0x90] sm:$0xff]
        %v359 = vld [vmem:[%s4 + $0x98] sm:$0xff]
        %v360 = vld [vmem:[%s4 + $0xa0] sm:$0xff]
        %v361 = vld [vmem:[%s4 + $0xa8] sm:$0xf]
        %v362 = vld [vmem:[%s4 + $0xb0] sm:$0xf]
        %v363 = vld [vmem:[%s4 + $0xb8] sm:$0xf]
        %v364 = vld [vmem:[%s4 + $0xc0] sm:$0xf]
        %v365 = vld [vmem:[%s4 + $0xc8] sm:$0xf]
        %v366 = vld [vmem:[%s4 + $0xd0] sm:$0xf]
        %v367 = vld [vmem:[%s4 + $0xd8] sm:$0xf]
        %v368 = vld [vmem:[%s5] sm:$0xff]
        %v369 = vld [vmem:[%s5 + $0x8] sm:$0xff]
        %v370 = vld [vmem:[%s5 + $0x10] sm:$0xff]
        %v371 = vld [vmem:[%s5 + $0x18] sm:$0xff]
        %v372 = vld [vmem:[%s5 + $0x20] sm:$0xff]
        %v373 = vld [vmem:[%s5 + $0x28] sm:$0xff]
        %v374 = vld [vmem:[%s5 + $0x30] sm:$0xff]
        %v375 = vld [vmem:[%s5 + $0x38] sm:$0xff]
        %v376 = vld [vmem:[%s5 + $0x40] sm:$0xff]
        %v377 = vld [vmem:[%s5 + $0x48] sm:$0xff]
        %v378 = vld [vmem:[%s5 + $0x50] sm:$0xff]
        %v379 = vld [vmem:[%s5 + $0x58] sm:$0xff]
        %v380 = vld [vmem:[%s5 + $0x60] sm:$0xff]
        %v381 = vld [vmem:[%s5 + $0x68] sm:$0xff]
        %v382 = vld [vmem:[%s5 + $0x70] sm:$0xff]
        %v383 = vld [vmem:[%s5 + $0x78] sm:$0xff]
        %386 = vrot.lane.b32.xlu0 %v305, 96
        %v387 = vpop.permute.xlu0 %386
        %388 = vrot.lane.b32.xlu0 %v306, 96
        %v389 = vpop.permute.xlu0 %388
        %vm390 = vcmask 785408
        %v391 = vsel %vm390, %v387, %v389
        %v395 = vsel %vm390, %v389, %v387
        %v396 = vmul.f32 %v305, %v391
        %v397 = vmul.f32 %v306, %v395
        %398 = vrot.lane.b32.xlu0 %v305, 64
        %v399 = vpop.permute.xlu0 %398
        %400 = vrot.lane.b32.xlu0 %v306, 64
        %v401 = vpop.permute.xlu0 %400
        %vm402 = vcmask 523264
        %v403 = vsel %vm402, %v399, %v401
        %v407 = vsel %vm402, %v401, %v399
        %v408 = vmul.f32 %v305, %v403
        %v409 = vmul.f32 %v306, %v407
        %410 = vrot.lane.b32.xlu0 %v305, 32
        %v411 = vpop.permute.xlu0 %410
        %412 = vrot.lane.b32.xlu0 %v306, 32
        %v413 = vpop.permute.xlu0 %412
        %vm414 = vcmask 261120
        %v415 = vsel %vm414, %v411, %v413
        %v419 = vsel %vm414, %v413, %v411
        %v420 = vmul.f32 %v305, %v415
        %v421 = vmul.f32 %v306, %v419
        %v422 = vmul.f32 %v305, %v306
        %v423 = vpack.c.bf16 %v396, %v396
        %v425 = vperm.slane %v323, 0
        %v443 = vunpack.c.l.b16 %v307
        %v444 = vunpack.c.l.b16 %v308
        %v445 = vunpack.c.l.b16 %v309
        %v446 = vunpack.c.l.b16 %v310
        %v447 = vunpack.c.l.b16 %v311
        %v448 = vunpack.c.l.b16 %v312
        %v449 = vunpack.c.l.b16 %v313
        %v450 = vunpack.c.l.b16 %v314
        %v451 = vunpack.c.l.b16 %v315
        %v452 = vunpack.c.l.b16 %v316
        %v453 = vunpack.c.l.b16 %v317
        %v454 = vunpack.c.l.b16 %v318
        %v455 = vunpack.c.l.b16 %v319
        %v456 = vunpack.c.l.b16 %v320
        %v457 = vunpack.c.l.b16 %v321
        %v458 = vunpack.c.l.b16 %v322
        %v459 = vpack.c.b16 %v444, %v443
        %v460 = vpack.c.b16 %v446, %v445
        %v461 = vpack.c.b16 %v448, %v447
        %v462 = vpack.c.b16 %v450, %v449
        %v463 = vpack.c.b16 %v452, %v451
        %v464 = vpack.c.b16 %v454, %v453
        %v465 = vpack.c.b16 %v456, %v455
        %v466 = vpack.c.b16 %v458, %v457
        %475 = vmatpush.bf16.msra.mxu0 %v466
        %476 = vmatpush.bf16.msra.mxu0 %v465
        %477 = vmatpush.bf16.msra.mxu0 %v464
        %478 = vmatpush.bf16.msra.mxu0 %v463
        %479 = vmatpush.bf16.msra.mxu0 %v462
        %480 = vmatpush.bf16.msra.mxu0 %v461
        %481 = vmatpush.bf16.msra.mxu0 %v460
        %482 = vmatpush.bf16.msra.mxu0 %v459
        %483 = vmatmul.bf16.gmra.mxu0 %v423
        %v484 = vpop.f32.mrf.mxu0
        %v485 = vadd.f32 %v425, %v484
        %v486 = vpop.f32.mrf.mxu0
        %487 = vdwg.mxu0
        %v488 = vmax.f32 %v485, 0.0
        %489 = vmatpush.msra.mxu0 %v339
        %490 = vmatpush.msra.mxu0 %v338
        %491 = vmatpush.msra.mxu0 %v337
        %492 = vmatpush.msra.mxu0 %v336
        %493 = vmatpush.msra.mxu0 %v335
        %494 = vmatpush.msra.mxu0 %v334
        %495 = vmatpush.msra.mxu0 %v333
        %496 = vmatpush.msra.mxu0 %v332
        %497 = vmatpush.msra.mxu0 %v331
        %498 = vmatpush.msra.mxu0 %v330
        %499 = vmatpush.msra.mxu0 %v329
        %500 = vmatpush.msra.mxu0 %v328
        %501 = vmatpush.msra.mxu0 %v327
        %502 = vmatpush.msra.mxu0 %v326
        %503 = vmatpush.msra.mxu0 %v325
        %504 = vmatpush.msra.mxu0 %v324
        %505 = vmatmul.f32.gmra.mxu0 %v488
        %v506 = vpop.f32.mrf.mxu0
        %v507 = vadd.f32 0.0, %v506
        %508 = vdwg.mxu0
        %v509 = vpack.c.bf16 %v397, %v397
        %510 = vmatpush.bf16.msra.mxu0 %v466
        %511 = vmatpush.bf16.msra.mxu0 %v465
        %512 = vmatpush.bf16.msra.mxu0 %v464
        %513 = vmatpush.bf16.msra.mxu0 %v463
        %514 = vmatpush.bf16.msra.mxu0 %v462
        %515 = vmatpush.bf16.msra.mxu0 %v461
        %516 = vmatpush.bf16.msra.mxu0 %v460
        %517 = vmatpush.bf16.msra.mxu0 %v459
        %518 = vmatmul.bf16.gmra.mxu0 %v509
        %v519 = vpop.f32.mrf.mxu0
        %v520 = vadd.f32 %v425, %v519
        %v521 = vpop.f32.mrf.mxu0
        %522 = vdwg.mxu0
        %v523 = vmax.f32 %v520, 0.0
        %524 = vmatpush.msra.mxu0 %v339
        %525 = vmatpush.msra.mxu0 %v338
        %526 = vmatpush.msra.mxu0 %v337
        %527 = vmatpush.msra.mxu0 %v336
        %528 = vmatpush.msra.mxu0 %v335
        %529 = vmatpush.msra.mxu0 %v334
        %530 = vmatpush.msra.mxu0 %v333
        %531 = vmatpush.msra.mxu0 %v332
        %532 = vmatpush.msra.mxu0 %v331
        %533 = vmatpush.msra.mxu0 %v330
        %534 = vmatpush.msra.mxu0 %v329
        %535 = vmatpush.msra.mxu0 %v328
        %536 = vmatpush.msra.mxu0 %v327
        %537 = vmatpush.msra.mxu0 %v326
        %538 = vmatpush.msra.mxu0 %v325
        %539 = vmatpush.msra.mxu0 %v324
        %540 = vmatmul.f32.gmra.mxu0 %v523
        %v541 = vpop.f32.mrf.mxu0
        %v542 = vadd.f32 0.0, %v541
        %543 = vdwg.mxu0
        %v544 = vpack.c.bf16 %v408, %v408
        %545 = vmatpush.bf16.msra.mxu0 %v466
        %546 = vmatpush.bf16.msra.mxu0 %v465
        %547 = vmatpush.bf16.msra.mxu0 %v464
        %548 = vmatpush.bf16.msra.mxu0 %v463
        %549 = vmatpush.bf16.msra.mxu0 %v462
        %550 = vmatpush.bf16.msra.mxu0 %v461
        %551 = vmatpush.bf16.msra.mxu0 %v460
        %552 = vmatpush.bf16.msra.mxu0 %v459
        %553 = vmatmul.bf16.gmra.mxu0 %v544
        %v554 = vpop.f32.mrf.mxu0
        %v555 = vadd.f32 %v425, %v554
        %v556 = vpop.f32.mrf.mxu0
        %557 = vdwg.mxu0
        %v558 = vmax.f32 %v555, 0.0
        %559 = vmatpush.msra.mxu0 %v339
        %560 = vmatpush.msra.mxu0 %v338
        %561 = vmatpush.msra.mxu0 %v337
        %562 = vmatpush.msra.mxu0 %v336
        %563 = vmatpush.msra.mxu0 %v335
        %564 = vmatpush.msra.mxu0 %v334
        %565 = vmatpush.msra.mxu0 %v333
        %566 = vmatpush.msra.mxu0 %v332
        %567 = vmatpush.msra.mxu0 %v331
        %568 = vmatpush.msra.mxu0 %v330
        %569 = vmatpush.msra.mxu0 %v329
        %570 = vmatpush.msra.mxu0 %v328
        %571 = vmatpush.msra.mxu0 %v327
        %572 = vmatpush.msra.mxu0 %v326
        %573 = vmatpush.msra.mxu0 %v325
        %574 = vmatpush.msra.mxu0 %v324
        %575 = vmatmul.f32.gmra.mxu0 %v558
        %v576 = vpop.f32.mrf.mxu0
        %v577 = vadd.f32 0.0, %v576
        %578 = vdwg.mxu0
        %v579 = vpack.c.bf16 %v409, %v409
        %580 = vmatpush.bf16.msra.mxu0 %v466
        %581 = vmatpush.bf16.msra.mxu0 %v465
        %582 = vmatpush.bf16.msra.mxu0 %v464
        %583 = vmatpush.bf16.msra.mxu0 %v463
        %584 = vmatpush.bf16.msra.mxu0 %v462
        %585 = vmatpush.bf16.msra.mxu0 %v461
        %586 = vmatpush.bf16.msra.mxu0 %v460
        %587 = vmatpush.bf16.msra.mxu0 %v459
        %588 = vmatmul.bf16.gmra.mxu0 %v579
        %v589 = vpop.f32.mrf.mxu0
        %v590 = vadd.f32 %v425, %v589
        %v591 = vpop.f32.mrf.mxu0
        %592 = vdwg.mxu0
        %v593 = vmax.f32 %v590, 0.0
        %594 = vmatpush.msra.mxu0 %v339
        %595 = vmatpush.msra.mxu0 %v338
        %596 = vmatpush.msra.mxu0 %v337
        %597 = vmatpush.msra.mxu0 %v336
        %598 = vmatpush.msra.mxu0 %v335
        %599 = vmatpush.msra.mxu0 %v334
        %600 = vmatpush.msra.mxu0 %v333
        %601 = vmatpush.msra.mxu0 %v332
        %602 = vmatpush.msra.mxu0 %v331
        %603 = vmatpush.msra.mxu0 %v330
        %604 = vmatpush.msra.mxu0 %v329
        %605 = vmatpush.msra.mxu0 %v328
        %606 = vmatpush.msra.mxu0 %v327
        %607 = vmatpush.msra.mxu0 %v326
        %608 = vmatpush.msra.mxu0 %v325
        %609 = vmatpush.msra.mxu0 %v324
        %610 = vmatmul.f32.gmra.mxu0 %v593
        %v611 = vpop.f32.mrf.mxu0
        %v612 = vadd.f32 0.0, %v611
        %613 = vdwg.mxu0
        %v614 = vpack.c.bf16 %v420, %v420
        %615 = vmatpush.bf16.msra.mxu0 %v466
        %616 = vmatpush.bf16.msra.mxu0 %v465
        %617 = vmatpush.bf16.msra.mxu0 %v464
        %618 = vmatpush.bf16.msra.mxu0 %v463
        %619 = vmatpush.bf16.msra.mxu0 %v462
        %620 = vmatpush.bf16.msra.mxu0 %v461
        %621 = vmatpush.bf16.msra.mxu0 %v460
        %622 = vmatpush.bf16.msra.mxu0 %v459
        %623 = vmatmul.bf16.gmra.mxu0 %v614
        %v624 = vpop.f32.mrf.mxu0
        %v625 = vadd.f32 %v425, %v624
        %v626 = vpop.f32.mrf.mxu0
        %627 = vdwg.mxu0
        %v628 = vmax.f32 %v625, 0.0
        %629 = vmatpush.msra.mxu0 %v339
        %630 = vmatpush.msra.mxu0 %v338
        %631 = vmatpush.msra.mxu0 %v337
        %632 = vmatpush.msra.mxu0 %v336
        %633 = vmatpush.msra.mxu0 %v335
        %634 = vmatpush.msra.mxu0 %v334
        %635 = vmatpush.msra.mxu0 %v333
        %636 = vmatpush.msra.mxu0 %v332
        %637 = vmatpush.msra.mxu0 %v331
        %638 = vmatpush.msra.mxu0 %v330
        %639 = vmatpush.msra.mxu0 %v329
        %640 = vmatpush.msra.mxu0 %v328
        %641 = vmatpush.msra.mxu0 %v327
        %642 = vmatpush.msra.mxu0 %v326
        %643 = vmatpush.msra.mxu0 %v325
        %644 = vmatpush.msra.mxu0 %v324
        %645 = vmatmul.f32.gmra.mxu0 %v628
        %v646 = vpop.f32.mrf.mxu0
        %v647 = vadd.f32 0.0, %v646
        %648 = vdwg.mxu0
        %v649 = vpack.c.bf16 %v421, %v421
        %650 = vmatpush.bf16.msra.mxu0 %v466
        %651 = vmatpush.bf16.msra.mxu0 %v465
        %652 = vmatpush.bf16.msra.mxu0 %v464
        %653 = vmatpush.bf16.msra.mxu0 %v463
        %654 = vmatpush.bf16.msra.mxu0 %v462
        %655 = vmatpush.bf16.msra.mxu0 %v461
        %656 = vmatpush.bf16.msra.mxu0 %v460
        %657 = vmatpush.bf16.msra.mxu0 %v459
        %658 = vmatmul.bf16.gmra.mxu0 %v649
        %v659 = vpop.f32.mrf.mxu0
        %v660 = vadd.f32 %v425, %v659
        %v661 = vpop.f32.mrf.mxu0
        %662 = vdwg.mxu0
        %v663 = vmax.f32 %v660, 0.0
        %664 = vmatpush.msra.mxu0 %v339
        %665 = vmatpush.msra.mxu0 %v338
        %666 = vmatpush.msra.mxu0 %v337
        %667 = vmatpush.msra.mxu0 %v336
        %668 = vmatpush.msra.mxu0 %v335
        %669 = vmatpush.msra.mxu0 %v334
        %670 = vmatpush.msra.mxu0 %v333
        %671 = vmatpush.msra.mxu0 %v332
        %672 = vmatpush.msra.mxu0 %v331
        %673 = vmatpush.msra.mxu0 %v330
        %674 = vmatpush.msra.mxu0 %v329
        %675 = vmatpush.msra.mxu0 %v328
        %676 = vmatpush.msra.mxu0 %v327
        %677 = vmatpush.msra.mxu0 %v326
        %678 = vmatpush.msra.mxu0 %v325
        %679 = vmatpush.msra.mxu0 %v324
        %680 = vmatmul.f32.gmra.mxu0 %v663
        %v681 = vpop.f32.mrf.mxu0
        %v682 = vadd.f32 0.0, %v681
        %683 = vdwg.mxu0
        %v684 = vpack.c.bf16 %v422, %v422
        %685 = vmatpush.bf16.msra.mxu0 %v466
        %686 = vmatpush.bf16.msra.mxu0 %v465
        %687 = vmatpush.bf16.msra.mxu0 %v464
        %688 = vmatpush.bf16.msra.mxu0 %v463
        %689 = vmatpush.bf16.msra.mxu0 %v462
        %690 = vmatpush.bf16.msra.mxu0 %v461
        %691 = vmatpush.bf16.msra.mxu0 %v460
        %692 = vmatpush.bf16.msra.mxu0 %v459
        %693 = vmatmul.bf16.gmra.mxu0 %v684
        %v694 = vpop.f32.mrf.mxu0
        %v695 = vadd.f32 %v425, %v694
        %v696 = vpop.f32.mrf.mxu0
        %697 = vdwg.mxu0
        %v698 = vmax.f32 %v695, 0.0
        %699 = vmatpush.msra.mxu0 %v339
        %700 = vmatpush.msra.mxu0 %v338
        %701 = vmatpush.msra.mxu0 %v337
        %702 = vmatpush.msra.mxu0 %v336
        %703 = vmatpush.msra.mxu0 %v335
        %704 = vmatpush.msra.mxu0 %v334
        %705 = vmatpush.msra.mxu0 %v333
        %706 = vmatpush.msra.mxu0 %v332
        %707 = vmatpush.msra.mxu0 %v331
        %708 = vmatpush.msra.mxu0 %v330
        %709 = vmatpush.msra.mxu0 %v329
        %710 = vmatpush.msra.mxu0 %v328
        %711 = vmatpush.msra.mxu0 %v327
        %712 = vmatpush.msra.mxu0 %v326
        %713 = vmatpush.msra.mxu0 %v325
        %714 = vmatpush.msra.mxu0 %v324
        %715 = vmatmul.f32.gmra.mxu0 %v698
        %v716 = vpop.f32.mrf.mxu0
        %v717 = vadd.f32 0.0, %v716
        %718 = vdwg.mxu0
        %720 = vrot.lane.b32.xlu0 %v542, 4
        %v721 = vpop.permute.xlu0 %720
        %724 = vrot.lane.b32.xlu0 %v577, 8
        %v725 = vpop.permute.xlu0 %724
        %728 = vrot.lane.b32.xlu0 %v612, 12
        %v729 = vpop.permute.xlu0 %728
        %732 = vrot.lane.b32.xlu0 %v647, 16
        %v733 = vpop.permute.xlu0 %732
        %736 = vrot.lane.b32.xlu0 %v682, 20
        %v737 = vpop.permute.xlu0 %736
        %740 = vrot.lane.b32.xlu0 %v717, 24
        %v741 = vpop.permute.xlu0 %740
        %vm743 = vcmask 31744
        %v744 = vsel %vm743, %v507, %v721
        %vm745 = vcmask 64512
        %v746 = vsel %vm745, %v744, %v725
        %vm747 = vcmask 97280
        %v748 = vsel %vm747, %v746, %v729
        %vm749 = vcmask 130048
        %v750 = vsel %vm749, %v748, %v733
        %vm751 = vcmask 162816
        %v752 = vsel %vm751, %v750, %v737
        %vm753 = vcmask 195584
        %v754 = vsel %vm753, %v752, %v741
        %vm755 = vcmask 228352
        %v756 = vsel %vm755, %v754, -inf
        %757 = vmax.xlane.f32.xlu0 %v756
        %v758 = vpop.xlane.xlu0 %757
        %v759 = vsub.f32 %v754, %v758
        %v760 = vmul.f32 %v759, 1.442695
        %v761 = vpow.pop %v760
        %v762 = vsel %vm755, %v761, 0.0
        %763 = vadd.xlane.f32.xlu0 %v762
        %v764 = vpop.xlane.xlu0 %763
        %v765 = vrcp.pop %v764
        %v766 = vmul.f32 %v764, %v765
        %v767 = vsub.f32 1.0, %v766
        %v768 = vmul.f32 %v765, %v767
        %v769 = vadd.f32 %v765, %v768
        %vm770 = vweird.f32 %v764
        %vm771 = vweird.f32 %v765
        %vm772 = vmor %vm770, %vm771
        %v773 = vsel %vm772, %v765, %v769
        %v774 = vand.u32 2147483647, %v764
        %vm775 = vcmp.eq.f32.partialorder %v774, 8.507059e+37
        %v776 = vand.u32 %v764, 2147483648
        %v777 = vor.u32 1.1754944e-38, %v776
        %v778 = vsel %vm775, %v777, %v773
        %v779 = vmul.f32 %v761, %v778
        %780 = vst.msk [vmem:[%s299] sm:$0xff] %vm755, %v779
        %v782 = vsel %vm755, %v779, 0
        %vm784 = vcmask 1043456
        %v786 = vsel %vm784, %v361, 0
        %v789 = vsel %vm784, %v362, 0
        %v792 = vsel %vm784, %v363, 0
        %v795 = vsel %vm784, %v364, 0
        %v798 = vsel %vm784, %v365, 0
        %v801 = vsel %vm784, %v366, 0
        %v804 = vsel %vm784, %v367, 0
        %806 = vmatpush.msra.mxu0 0.0
        %807 = vmatpush.msra.mxu0 0.0
        %808 = vmatpush.msra.mxu0 0.0
        %809 = vmatpush.msra.mxu0 0.0
        %810 = vmatpush.msra.mxu0 0.0
        %811 = vmatpush.msra.mxu0 0.0
        %812 = vmatpush.msra.mxu0 0.0
        %813 = vmatpush.msra.mxu0 0.0
        %814 = vmatpush.msra.mxu0 0.0
        %815 = vmatpush.msra.mxu0 0.0
        %816 = vmatpush.msra.mxu0 0.0
        %817 = vmatpush.msra.mxu0 0.0
        %818 = vmatpush.msra.mxu0 %v786
        %819 = vmatpush.msra.mxu0 %v354
        %820 = vmatpush.msra.mxu0 %v347
        %821 = vmatpush.msra.mxu0 %v340
        %822 = vmatmul.f32.gmra.mxu0 %v782
        %v823 = vpop.f32.mrf.mxu0
        %v824 = vadd.f32 0.0, %v823
        %825 = vdwg.mxu0
        %826 = vmatpush.msra.mxu0 0.0
        %827 = vmatpush.msra.mxu0 0.0
        %828 = vmatpush.msra.mxu0 0.0
        %829 = vmatpush.msra.mxu0 0.0
        %830 = vmatpush.msra.mxu0 0.0
        %831 = vmatpush.msra.mxu0 0.0
        %832 = vmatpush.msra.mxu0 0.0
        %833 = vmatpush.msra.mxu0 0.0
        %834 = vmatpush.msra.mxu0 0.0
        %835 = vmatpush.msra.mxu0 0.0
        %836 = vmatpush.msra.mxu0 0.0
        %837 = vmatpush.msra.mxu0 0.0
        %838 = vmatpush.msra.mxu0 %v789
        %839 = vmatpush.msra.mxu0 %v355
        %840 = vmatpush.msra.mxu0 %v348
        %841 = vmatpush.msra.mxu0 %v341
        %842 = vmatmul.f32.gmra.mxu0 %v782
        %v843 = vpop.f32.mrf.mxu0
        %v844 = vadd.f32 0.0, %v843
        %845 = vdwg.mxu0
        %846 = vmatpush.msra.mxu0 0.0
        %847 = vmatpush.msra.mxu0 0.0
        %848 = vmatpush.msra.mxu0 0.0
        %849 = vmatpush.msra.mxu0 0.0
        %850 = vmatpush.msra.mxu0 0.0
        %851 = vmatpush.msra.mxu0 0.0
        %852 = vmatpush.msra.mxu0 0.0
        %853 = vmatpush.msra.mxu0 0.0
        %854 = vmatpush.msra.mxu0 0.0
        %855 = vmatpush.msra.mxu0 0.0
        %856 = vmatpush.msra.mxu0 0.0
        %857 = vmatpush.msra.mxu0 0.0
        %858 = vmatpush.msra.mxu0 %v792
        %859 = vmatpush.msra.mxu0 %v356
        %860 = vmatpush.msra.mxu0 %v349
        %861 = vmatpush.msra.mxu0 %v342
        %862 = vmatmul.f32.gmra.mxu0 %v782
        %v863 = vpop.f32.mrf.mxu0
        %v864 = vadd.f32 0.0, %v863
        %865 = vdwg.mxu0
        %866 = vmatpush.msra.mxu0 0.0
        %867 = vmatpush.msra.mxu0 0.0
        %868 = vmatpush.msra.mxu0 0.0
        %869 = vmatpush.msra.mxu0 0.0
        %870 = vmatpush.msra.mxu0 0.0
        %871 = vmatpush.msra.mxu0 0.0
        %872 = vmatpush.msra.mxu0 0.0
        %873 = vmatpush.msra.mxu0 0.0
        %874 = vmatpush.msra.mxu0 0.0
        %875 = vmatpush.msra.mxu0 0.0
        %876 = vmatpush.msra.mxu0 0.0
        %877 = vmatpush.msra.mxu0 0.0
        %878 = vmatpush.msra.mxu0 %v795
        %879 = vmatpush.msra.mxu0 %v357
        %880 = vmatpush.msra.mxu0 %v350
        %881 = vmatpush.msra.mxu0 %v343
        %882 = vmatmul.f32.gmra.mxu0 %v782
        %v883 = vpop.f32.mrf.mxu0
        %v884 = vadd.f32 0.0, %v883
        %885 = vdwg.mxu0
        %886 = vmatpush.msra.mxu0 0.0
        %887 = vmatpush.msra.mxu0 0.0
        %888 = vmatpush.msra.mxu0 0.0
        %889 = vmatpush.msra.mxu0 0.0
        %890 = vmatpush.msra.mxu0 0.0
        %891 = vmatpush.msra.mxu0 0.0
        %892 = vmatpush.msra.mxu0 0.0
        %893 = vmatpush.msra.mxu0 0.0
        %894 = vmatpush.msra.mxu0 0.0
        %895 = vmatpush.msra.mxu0 0.0
        %896 = vmatpush.msra.mxu0 0.0
        %897 = vmatpush.msra.mxu0 0.0
        %898 = vmatpush.msra.mxu0 %v798
        %899 = vmatpush.msra.mxu0 %v358
        %900 = vmatpush.msra.mxu0 %v351
        %901 = vmatpush.msra.mxu0 %v344
        %902 = vmatmul.f32.gmra.mxu0 %v782
        %v903 = vpop.f32.mrf.mxu0
        %v904 = vadd.f32 0.0, %v903
        %905 = vdwg.mxu0
        %906 = vmatpush.msra.mxu0 0.0
        %907 = vmatpush.msra.mxu0 0.0
        %908 = vmatpush.msra.mxu0 0.0
        %909 = vmatpush.msra.mxu0 0.0
        %910 = vmatpush.msra.mxu0 0.0
        %911 = vmatpush.msra.mxu0 0.0
        %912 = vmatpush.msra.mxu0 0.0
        %913 = vmatpush.msra.mxu0 0.0
        %914 = vmatpush.msra.mxu0 0.0
        %915 = vmatpush.msra.mxu0 0.0
        %916 = vmatpush.msra.mxu0 0.0
        %917 = vmatpush.msra.mxu0 0.0
        %918 = vmatpush.msra.mxu0 %v801
        %919 = vmatpush.msra.mxu0 %v359
        %920 = vmatpush.msra.mxu0 %v352
        %921 = vmatpush.msra.mxu0 %v345
        %922 = vmatmul.f32.gmra.mxu0 %v782
        %v923 = vpop.f32.mrf.mxu0
        %v924 = vadd.f32 0.0, %v923
        %925 = vdwg.mxu0
        %926 = vmatpush.msra.mxu0 0.0
        %927 = vmatpush.msra.mxu0 0.0
        %928 = vmatpush.msra.mxu0 0.0
        %929 = vmatpush.msra.mxu0 0.0
        %930 = vmatpush.msra.mxu0 0.0
        %931 = vmatpush.msra.mxu0 0.0
        %932 = vmatpush.msra.mxu0 0.0
        %933 = vmatpush.msra.mxu0 0.0
        %934 = vmatpush.msra.mxu0 0.0
        %935 = vmatpush.msra.mxu0 0.0
        %936 = vmatpush.msra.mxu0 0.0
        %937 = vmatpush.msra.mxu0 0.0
        %938 = vmatpush.msra.mxu0 %v804
        %939 = vmatpush.msra.mxu0 %v360
        %940 = vmatpush.msra.mxu0 %v353
        %941 = vmatpush.msra.mxu0 %v346
        %942 = vmatmul.f32.gmra.mxu0 %v782
        %v943 = vpop.f32.mrf.mxu0
        %v944 = vadd.f32 0.0, %v943
        %945 = vdwg.mxu0
        %v946 = vmul.f32 %v824, %v396
        %v947 = vadd.f32 %v946, 0.0
        %v948 = vmul.f32 %v844, %v397
        %v949 = vadd.f32 %v947, %v948
        %v950 = vmul.f32 %v864, %v408
        %v951 = vadd.f32 %v949, %v950
        %v952 = vmul.f32 %v884, %v409
        %v953 = vadd.f32 %v951, %v952
        %v954 = vmul.f32 %v904, %v420
        %v955 = vadd.f32 %v953, %v954
        %v956 = vmul.f32 %v924, %v421
        %v957 = vadd.f32 %v955, %v956
        %v958 = vmul.f32 %v944, %v422
        %v959 = vadd.f32 %v957, %v958
        %960 = vmatpush.msra.mxu0 %v383
        %961 = vmatpush.msra.mxu0 %v382
        %962 = vmatpush.msra.mxu0 %v381
        %963 = vmatpush.msra.mxu0 %v380
        %964 = vmatpush.msra.mxu0 %v379
        %965 = vmatpush.msra.mxu0 %v378
        %966 = vmatpush.msra.mxu0 %v377
        %967 = vmatpush.msra.mxu0 %v376
        %968 = vmatpush.msra.mxu0 %v375
        %969 = vmatpush.msra.mxu0 %v374
        %970 = vmatpush.msra.mxu0 %v373
        %971 = vmatpush.msra.mxu0 %v372
        %972 = vmatpush.msra.mxu0 %v371
        %973 = vmatpush.msra.mxu0 %v370
        %974 = vmatpush.msra.mxu0 %v369
        %975 = vmatpush.msra.mxu0 %v368
        %976 = vmatmul.f32.gmra.mxu0 %v959
        %v977 = vpop.f32.mrf.mxu0
        %v978 = vadd.f32 0.0, %v977
        %979 = vdwg.mxu0
        %980 = vst.msk [vmem:[%s292] sm:$0xff] %vm414, %v978
        %s981 = sand.u32 %s165, 1
        %s982 = scalar_lea.sflag [#allocation4], %s981
        %s983 = sand.u32 %s165, 1
        %s984 = smul.addr %s983, 8
        %s985 = scalar_lea.vmem [#allocation5], %s984
        %s986 = sand.u32 %s191, 1
        %s987 = scalar_lea.sflag [#allocation7], %s986
        %s988 = sand.u32 %s191, 1
        %s989 = smul.addr %s988, 8
        %s990 = scalar_lea.vmem [#allocation6], %s989
        // Predicated region
        $region49: #{tpu_custom_call.1} parent=43 // pred_check
          %p991 = pneg %p175
        $region50: #{tpu_custom_call.1} parent=43 // pred_check_branch
          %993 = sbr.rel (%p991) target = $region52
        $region51: #{tpu_custom_call.1} parent=43 // pred_region
          %995 = vsyncadd %s982, 0
          %s996 = smul.addr %s26, 8
          %s997 = scalar_lea.hbm %s6, %s996
          %s999 = sshll.u32 %s985, 4
          %s1000 = int_to_ptr.vmem [resolvable:$true] %s999
          %s1001 = sshll.u32 %s997, 4
          %s1002 = int_to_ptr.hbm [resolvable:$true] %s1001
          %1004 = dma.vmem_to_hbm [thread:$0]  %s1000, 128, %s1002, %s982
        $region52: #{tpu_custom_call.1} parent=43 // pred_fallthru
          _
        // Predicated region
        $region53: #{tpu_custom_call.1} parent=43 // pred_check
          %p1005 = pneg %p201
        $region54: #{tpu_custom_call.1} parent=43 // pred_check_branch
          %1007 = sbr.rel (%p1005) target = $region56
        $region55: #{tpu_custom_call.1} parent=43 // pred_region
          %1009 = vsyncadd %s987, 0
          %s1010 = smul.addr %s26, 8
          %s1011 = scalar_lea.hbm %s7, %s1010
          %s1013 = sshll.u32 %s990, 4
          %s1014 = int_to_ptr.vmem [resolvable:$true] %s1013
          %s1015 = sshll.u32 %s1011, 4
          %s1016 = int_to_ptr.hbm [resolvable:$true] %s1015
          %1018 = dma.vmem_to_hbm [thread:$0]  %s1014, 128, %s1016, %s987
        $region56: #{tpu_custom_call.1} parent=43 // pred_fallthru
          _
      $region44: #{tpu_custom_call.1} parent=5 // pred_fallthru
        _
      %p1019 = scmp.le.s32.totalorder 2, %s21
      // Predicated region
      $region57: #{tpu_custom_call.1} parent=5 // pred_check
        %p1020 = pneg %p1019
      $region58: #{tpu_custom_call.1} parent=5 // pred_check_branch
        %1022 = sbr.rel (%p1020) target = $region60
      $region59: #{tpu_custom_call.1} parent=5 // pred_region
        %s1023 = ssub.s32 %s21, 2
        // Predicated region
        $region61: #{tpu_custom_call.1} parent=59 // pred_check
          %p1024 = pneg %p181
        $region62: #{tpu_custom_call.1} parent=59 // pred_check_branch
          %1026 = sbr.rel (%p1024) target = $region64
        $region63: #{tpu_custom_call.1} parent=59 // pred_region
          %s1027 = sand.u32 %s166, 1
          %s1028 = scalar_lea.sflag [#allocation4], %s1027
          %s1029 = sand.u32 %s166, 1
          %s1030 = smul.addr %s1029, 8
          %s1031 = scalar_lea.vmem [#allocation5], %s1030
          %1033 = dma.done %s1028, 128
        $region64: #{tpu_custom_call.1} parent=59 // pred_fallthru
          _
        // Predicated region
        $region65: #{tpu_custom_call.1} parent=59 // pred_check
          %p1034 = pneg %p207
        $region66: #{tpu_custom_call.1} parent=59 // pred_check_branch
          %1036 = sbr.rel (%p1034) target = $region68
        $region67: #{tpu_custom_call.1} parent=59 // pred_region
          %s1037 = sand.u32 %s192, 1
          %s1038 = scalar_lea.sflag [#allocation7], %s1037
          %s1039 = sand.u32 %s192, 1
          %s1040 = smul.addr %s1039, 8
          %s1041 = scalar_lea.vmem [#allocation6], %s1040
          %1043 = dma.done %s1038, 128
        $region68: #{tpu_custom_call.1} parent=59 // pred_fallthru
          _
      $region60: #{tpu_custom_call.1} parent=5 // pred_fallthru
        _
    $region6: #{tpu_custom_call.1} parent=1 // loop_footer
      %s25 = sadd.s32 1, %s21
    $region7: #{tpu_custom_call.1} parent=1 // loop_footer_branch
      %20 = sbr.rel target = $region3
    $region8: #{tpu_custom_call.1} parent=1 // loop_exit
      _
    %1044 = vsyncpa [#allocation3], 1
    %s1045 = scalar_lea.sflag [#allocation3], 1
    %1046 = vsyncpa %s1045, 1
    %1047 = vsyncpa [#allocation4], 1
    %s1048 = scalar_lea.sflag [#allocation4], 1
    %1049 = vsyncpa %s1048, 1
    %1050 = vsyncpa [#allocation7], 1
    %s1051 = scalar_lea.sflag [#allocation7], 1
    %1052 = vsyncpa %s1051, 1

</llo_original>
